<compile_context>
chip_gen: v5e
topology: v5e:2x2
jax: 0.10.0
libtpu: 0.0.40
codegen_flags: <defaults>
</compile_context>

<pallas_src>
import jax
import jax.numpy as jnp
from jax.experimental import pallas as pl
from jax.experimental.pallas import tpu as pltpu

LANE = 128           # lane width: pad weight N dims / biases to a multiple of this
SUBLANE_BF16 = 16    # bf16 sublane packing: batch-block rows must be a multiple
VMEM_BUDGET = 36 << 20   # keep well under v7x's 64 MiB per-TC VMEM


def _round_up(n, m):
    return ((n + m - 1) // m) * m


def _mlp_kernel(x_ref, w1_ref, b1_ref, w2_ref, b2_ref, w3_ref, b3_ref, o_ref):
    # fc1 + ReLU  (dropout = identity in inference)
    h1 = jnp.dot(x_ref[...], w1_ref[...], preferred_element_type=jnp.float32)
    h1 = jnp.maximum(h1 + b1_ref[...], 0.0)                     # f32 elementwise

    # fc2 + ReLU  (dropout = identity in inference)
    h2 = jnp.dot(h1.astype(jnp.bfloat16), w2_ref[...],
                 preferred_element_type=jnp.float32)
    h2 = jnp.maximum(h2 + b2_ref[...], 0.0)

    # fc3 + Sigmoid
    h3 = jnp.dot(h2.astype(jnp.bfloat16), w3_ref[...],
                 preferred_element_type=jnp.float32)
    o_ref[...] = jax.nn.sigmoid(h3 + b3_ref[...]).astype(o_ref.dtype)


def prepare_params(params, weight_dtype=jnp.bfloat16):
    """Pad weight N dims (and downstream K dims) to LANE multiples; cast to bf16.

    Weights come in transposed [in_features, out_features]; biases as [1, out].
    w1's K dim (= input_size) is intentionally NOT padded so the streamed
    activations need no lane padding.  Biases stay f32.
    """
    def pad_w(w, pad_k):
        fi, fo = w.shape
        ki = _round_up(fi, LANE) if pad_k else fi
        wp = jnp.zeros((ki, _round_up(fo, LANE)), weight_dtype)
        return wp.at[:fi, :fo].set(w.astype(weight_dtype))

    def pad_b(b):
        fo = b.shape[1]
        bp = jnp.zeros((1, _round_up(fo, LANE)), jnp.float32)
        return bp.at[:, :fo].set(b.astype(jnp.float32))

    return {
        "w1": pad_w(params["w1"], pad_k=False), "b1": pad_b(params["b1"]),
        "w2": pad_w(params["w2"], pad_k=True),  "b2": pad_b(params["b2"]),
        "w3": pad_w(params["w3"], pad_k=True),  "b3": pad_b(params["b3"]),
    }


def _choose_block(batch, block_batch):
    """Pick (tb, padded_batch): tb multiple of 16, padded_batch multiple of tb,
    bounded batch-padding waste, and >= 2 grid blocks when possible (megacore)."""
    block_batch = max(SUBLANE_BF16, _round_up(block_batch, SUBLANE_BF16))
    pb_min = _round_up(batch, SUBLANE_BF16)

    if pb_min <= block_batch:
        # Whole batch fits in one block.  Split in two (when evenly possible)
        # so dimension_semantics=("parallel",) can shard across v7x's 2 TCs.
        half = pb_min // 2
        if half >= SUBLANE_BF16 and half % SUBLANE_BF16 == 0:
            return half, pb_min
        return pb_min, pb_min

    # Large batch: take the largest tile whose extra padding stays small
    # (avoid e.g. batch=1100 padding up to 2048 with tb=1024).
    for tb in (block_batch, block_batch // 2, block_batch // 4, 128):
        tb = max(SUBLANE_BF16, _round_up(tb, SUBLANE_BF16))
        pb = _round_up(batch, tb)
        if pb - pb_min <= max(pb_min // 8, SUBLANE_BF16):
            return tb, pb
    return SUBLANE_BF16, pb_min


def job_matching_forward(x, kparams, out_size, block_batch=1024,
                         out_dtype=jnp.bfloat16):
    """x: [batch, input_size] f32 or bf16. kparams: padded params from prepare_params."""
    w1, b1 = kparams["w1"], kparams["b1"]
    w2, b2 = kparams["w2"], kparams["b2"]
    w3, b3 = kparams["w3"], kparams["b3"]

    batch, in_size = x.shape
    assert w1.shape[0] == in_size, "input feature dim mismatch"
    hidden_p, hidden2_p, out_p = w1.shape[1], w2.shape[1], w3.shape[1]

    tb, padded_batch = _choose_block(batch, block_batch)

    # VMEM budget: 2 pipeline buffers for x and out blocks + resident weights
    # + f32 intermediates.  Shrink tb if it would not fit (v7x: 64 MiB/TC).
    w_bytes = sum(int(a.size) * a.dtype.itemsize
                  for a in (w1, b1, w2, b2, w3, b3))
    out_itemsize = jnp.dtype(out_dtype).itemsize

    def vmem_estimate(tb_):
        x_blk = tb_ * in_size * 2                       # bf16 stream
        o_blk = tb_ * out_p * out_itemsize
        interm = tb_ * (hidden_p + hidden2_p + out_p) * 4  # f32 h1/h2/h3
        return 2 * (x_blk + o_blk) + w_bytes + interm

    while vmem_estimate(tb) > VMEM_BUDGET and tb > SUBLANE_BF16:
        tb = max(SUBLANE_BF16, _round_up(tb // 2, SUBLANE_BF16))
        padded_batch = _round_up(batch, tb)

    # Stream activations as bf16.  Fast path: no pad copy when already aligned;
    # otherwise fuse the f32->bf16 cast into a single half-size pad copy.
    x_s = x if x.dtype == jnp.bfloat16 else x.astype(jnp.bfloat16)
    if padded_batch != batch:
        x_s = jnp.zeros((padded_batch, in_size), jnp.bfloat16).at[:batch, :].set(x_s)

    grid = (padded_batch // tb,)

    # Weights / biases: constant block index -> VMEM-resident across grid steps.
    resident = lambda a: pl.BlockSpec(a.shape, lambda i: (0, 0))

    # Explicit scoped-VMEM limit (v5e default is only 16 MiB); stay under v7x's
    # 64 MiB physical.
    vmem_limit = int(min(56 << 20, max(24 << 20, 1.5 * vmem_estimate(tb))))

    out_padded = pl.pallas_call(
        _mlp_kernel,
        out_shape=jax.ShapeDtypeStruct((padded_batch, out_p), out_dtype),
        grid=grid,
        in_specs=[
            pl.BlockSpec((tb, in_size), lambda i: (i, 0)),   # streamed bf16 x
            resident(w1), resident(b1),
            resident(w2), resident(b2),
            resident(w3), resident(b3),
        ],
        out_specs=pl.BlockSpec((tb, out_p), lambda i: (i, 0)),
        compiler_params=pltpu.CompilerParams(
            dimension_semantics=("parallel",),               # megacore on v7x
            vmem_limit_bytes=vmem_limit),
    )(x_s, w1, b1, w2, b2, w3, b3)

    # Padded output columns hold sigmoid(0)=0.5 — always slice before use.
    return out_padded[:batch, :out_size]


def init_params(key, input_size, hidden_size, output_size):
    """Deterministic init mimicking nn.Linear's U(-1/sqrt(fan_in), 1/sqrt(fan_in)).
    Weights are stored transposed: [in_features, out_features]."""
    def linear(key, fan_in, fan_out):
        kw, kb = jax.random.split(key)
        bound = 1.0 / jnp.sqrt(fan_in)
        w = jax.random.uniform(kw, (fan_in, fan_out), jnp.float32, -bound, bound)
        b = jax.random.uniform(kb, (1, fan_out), jnp.float32, -bound, bound)
        return w, b

    k1, k2, k3 = jax.random.split(key, 3)
    w1, b1 = linear(k1, input_size, hidden_size)
    w2, b2 = linear(k2, hidden_size, hidden_size // 2)
    w3, b3 = linear(k3, hidden_size // 2, output_size)
    return {"w1": w1, "b1": b1, "w2": w2, "b2": b2, "w3": w3, "b3": b3}


def reference_forward(x, p):
    h1 = jnp.maximum(x @ p["w1"] + p["b1"], 0.0)
    h2 = jnp.maximum(h1 @ p["w2"] + p["b2"], 0.0)
    return jax.nn.sigmoid(h2 @ p["w3"] + p["b3"])


if __name__ == "__main__":
    batch = 8
    input_size = 32
    hidden_size = 32
    output_size = 8

    key = jax.random.PRNGKey(0)
    k_params, k_x = jax.random.split(key)

    params = init_params(k_params, input_size, hidden_size, output_size)
    kparams = prepare_params(params)                     # pad + cast once
    x = jax.random.normal(k_x, (batch, input_size), jnp.float32)

    out = job_matching_forward(x, kparams, output_size)
    out = jax.block_until_ready(out)

    ref = reference_forward(x, params)                   # f32 reference
    assert out.shape == (batch, output_size)
    # bf16 activation stream / matmul operands / output -> loosened tolerance.
    assert jnp.allclose(out.astype(jnp.float32), ref, atol=3e-2, rtol=3e-2), \
        "mismatch vs pure-JAX reference"

    print("KERNEL_OK")
</pallas_src>

<mosaic_0001>
module attributes {stable_mosaic.version = 11 : i64} {
  func.func @_mlp_kernel(%arg0: i32, %arg1: memref<16x32xbf16, #tpu.memory_space<vmem>>, %arg2: memref<32x128xbf16, #tpu.memory_space<vmem>>, %arg3: memref<1x128xf32, #tpu.memory_space<vmem>>, %arg4: memref<128x128xbf16, #tpu.memory_space<vmem>>, %arg5: memref<1x128xf32, #tpu.memory_space<vmem>>, %arg6: memref<128x128xbf16, #tpu.memory_space<vmem>>, %arg7: memref<1x128xf32, #tpu.memory_space<vmem>>, %arg8: memref<16x128xbf16, #tpu.memory_space<vmem>>) attributes {dimension_semantics = [#tpu.dimension_semantics<parallel>], iteration_bounds = array<i64: 1>, scalar_prefetch = 0 : i64, scratch_operands = 0 : i64, tpu.core_type = #tpu.core_type<tc>, window_params = [{transform_indices = @transform_0, window_bounds = array<i64: 16, 32>}, {pipeline_mode = #tpu.pipeline_mode<synchronous>, transform_indices = @transform_1, window_bounds = array<i64: 32, 128>}, {pipeline_mode = #tpu.pipeline_mode<synchronous>, transform_indices = @transform_2, window_bounds = array<i64: 1, 128>}, {pipeline_mode = #tpu.pipeline_mode<synchronous>, transform_indices = @transform_3, window_bounds = array<i64: 128, 128>}, {pipeline_mode = #tpu.pipeline_mode<synchronous>, transform_indices = @transform_4, window_bounds = array<i64: 1, 128>}, {pipeline_mode = #tpu.pipeline_mode<synchronous>, transform_indices = @transform_5, window_bounds = array<i64: 128, 128>}, {pipeline_mode = #tpu.pipeline_mode<synchronous>, transform_indices = @transform_6, window_bounds = array<i64: 1, 128>}, {transform_indices = @transform_7, window_bounds = array<i64: 16, 128>}]} {
    %c0 = arith.constant 0 : index
    %c0_0 = arith.constant 0 : index
    %0 = vector.load %arg1[%c0, %c0_0] : memref<16x32xbf16, #tpu.memory_space<vmem>>, vector<16x32xbf16>
    %c0_1 = arith.constant 0 : index
    %c0_2 = arith.constant 0 : index
    %1 = vector.load %arg2[%c0_1, %c0_2] : memref<32x128xbf16, #tpu.memory_space<vmem>>, vector<32x128xbf16>
    %cst = arith.constant dense<0.000000e+00> : vector<16x128xf32>
    %2 = tpu.matmul %0, %1, %cst {dimension_numbers = #tpu.dot_dimension_numbers<[1], [0], [0], [1], [0, 0, 1, 1], [], []>} : vector<16x32xbf16>, vector<32x128xbf16>, vector<16x128xf32> -> vector<16x128xf32>
    %c0_3 = arith.constant 0 : index
    %c0_4 = arith.constant 0 : index
    %3 = vector.load %arg3[%c0_3, %c0_4] : memref<1x128xf32, #tpu.memory_space<vmem>>, vector<1x128xf32>
    %4 = vector.broadcast %3 : vector<1x128xf32> to vector<16x128xf32>
    %5 = arith.addf %2, %4 : vector<16x128xf32>
    %cst_5 = arith.constant 0.000000e+00 : f32
    %6 = vector.broadcast %cst_5 : f32 to vector<16x128xf32>
    %7 = arith.maximumf %5, %6 : vector<16x128xf32>
    %8 = arith.truncf %7 : vector<16x128xf32> to vector<16x128xbf16>
    %c0_6 = arith.constant 0 : index
    %c0_7 = arith.constant 0 : index
    %9 = vector.load %arg4[%c0_6, %c0_7] : memref<128x128xbf16, #tpu.memory_space<vmem>>, vector<128x128xbf16>
    %cst_8 = arith.constant dense<0.000000e+00> : vector<16x128xf32>
    %10 = tpu.matmul %8, %9, %cst_8 {dimension_numbers = #tpu.dot_dimension_numbers<[1], [0], [0], [1], [0, 0, 1, 1], [], []>} : vector<16x128xbf16>, vector<128x128xbf16>, vector<16x128xf32> -> vector<16x128xf32>
    %c0_9 = arith.constant 0 : index
    %c0_10 = arith.constant 0 : index
    %11 = vector.load %arg5[%c0_9, %c0_10] : memref<1x128xf32, #tpu.memory_space<vmem>>, vector<1x128xf32>
    %12 = vector.broadcast %11 : vector<1x128xf32> to vector<16x128xf32>
    %13 = arith.addf %10, %12 : vector<16x128xf32>
    %cst_11 = arith.constant 0.000000e+00 : f32
    %14 = vector.broadcast %cst_11 : f32 to vector<16x128xf32>
    %15 = arith.maximumf %13, %14 : vector<16x128xf32>
    %16 = arith.truncf %15 : vector<16x128xf32> to vector<16x128xbf16>
    %c0_12 = arith.constant 0 : index
    %c0_13 = arith.constant 0 : index
    %17 = vector.load %arg6[%c0_12, %c0_13] : memref<128x128xbf16, #tpu.memory_space<vmem>>, vector<128x128xbf16>
    %cst_14 = arith.constant dense<0.000000e+00> : vector<16x128xf32>
    %18 = tpu.matmul %16, %17, %cst_14 {dimension_numbers = #tpu.dot_dimension_numbers<[1], [0], [0], [1], [0, 0, 1, 1], [], []>} : vector<16x128xbf16>, vector<128x128xbf16>, vector<16x128xf32> -> vector<16x128xf32>
    %c0_15 = arith.constant 0 : index
    %c0_16 = arith.constant 0 : index
    %19 = vector.load %arg7[%c0_15, %c0_16] : memref<1x128xf32, #tpu.memory_space<vmem>>, vector<1x128xf32>
    %20 = vector.broadcast %19 : vector<1x128xf32> to vector<16x128xf32>
    %21 = arith.addf %18, %20 : vector<16x128xf32>
    %22 = arith.negf %21 : vector<16x128xf32>
    %23 = math.exp %22 : vector<16x128xf32>
    %cst_17 = arith.constant 1.000000e+00 : f32
    %24 = vector.broadcast %cst_17 : f32 to vector<16x128xf32>
    %25 = arith.addf %24, %23 : vector<16x128xf32>
    %26 = arith.divf %24, %25 : vector<16x128xf32>
    %27 = arith.truncf %26 : vector<16x128xf32> to vector<16x128xbf16>
    %c0_18 = arith.constant 0 : index
    %c0_19 = arith.constant 0 : index
    %28 = vector.load %arg8[%c0_18, %c0_19] : memref<16x128xbf16, #tpu.memory_space<vmem>>, vector<16x128xbf16>
    tpu.vector_store %arg8[%c0_18, %c0_19], %27 {strides = array<i32>} : memref<16x128xbf16, #tpu.memory_space<vmem>>, vector<16x128xbf16>,
    return
  }
  func.func @transform_0(%arg0: i32) -> (i32, i32) {
    %c0_i32 = arith.constant 0 : i32
    %c0_i32_0 = arith.constant 0 : i32
    return %arg0, %c0_i32 : i32, i32
  }
  func.func @transform_1(%arg0: i32) -> (i32, i32) {
    %c0_i32 = arith.constant 0 : i32
    %c0_i32_0 = arith.constant 0 : i32
    %c0_i32_1 = arith.constant 0 : i32
    return %c0_i32, %c0_i32_0 : i32, i32
  }
  func.func @transform_2(%arg0: i32) -> (i32, i32) {
    %c0_i32 = arith.constant 0 : i32
    %c0_i32_0 = arith.constant 0 : i32
    %c0_i32_1 = arith.constant 0 : i32
    return %c0_i32, %c0_i32_0 : i32, i32
  }
  func.func @transform_3(%arg0: i32) -> (i32, i32) {
    %c0_i32 = arith.constant 0 : i32
    %c0_i32_0 = arith.constant 0 : i32
    %c0_i32_1 = arith.constant 0 : i32
    return %c0_i32, %c0_i32_0 : i32, i32
  }
  func.func @transform_4(%arg0: i32) -> (i32, i32) {
    %c0_i32 = arith.constant 0 : i32
    %c0_i32_0 = arith.constant 0 : i32
    %c0_i32_1 = arith.constant 0 : i32
    return %c0_i32, %c0_i32_0 : i32, i32
  }
  func.func @transform_5(%arg0: i32) -> (i32, i32) {
    %c0_i32 = arith.constant 0 : i32
    %c0_i32_0 = arith.constant 0 : i32
    %c0_i32_1 = arith.constant 0 : i32
    return %c0_i32, %c0_i32_0 : i32, i32
  }
  func.func @transform_6(%arg0: i32) -> (i32, i32) {
    %c0_i32 = arith.constant 0 : i32
    %c0_i32_0 = arith.constant 0 : i32
    %c0_i32_1 = arith.constant 0 : i32
    return %c0_i32, %c0_i32_0 : i32, i32
  }
  func.func @transform_7(%arg0: i32) -> (i32, i32) {
    %c0_i32 = arith.constant 0 : i32
    %c0_i32_0 = arith.constant 0 : i32
    return %arg0, %c0_i32 : i32, i32
  }
}

</mosaic_0001>

<llo_original>
// kernel: tpu_custom_call.1
$region0: #{tpu_custom_call.1}
  #allocation0 [shape = 'u32[]', space=smem, size = 0x4, offset = 0x4, fixed_abs, tag = 'smem constant byte address 0x4 - core index']
  #allocation1 [shape = 'u32[72,128]{1,0:T(1,128)}', space=vmem, size = 0x9000, scoped, tag = 'internal scratch']
  %s0 = inlined_call_operand.hbm [shape: bf16[16,32], index: 0, kind: input, shape index: {}]
  %s1 = inlined_call_operand.hbm [shape: bf16[32,128], index: 1, kind: input, shape index: {}]
  %s2 = inlined_call_operand.vmem [shape: f32[1,128], index: 2, kind: input, shape index: {}]
  %s3 = inlined_call_operand.hbm [shape: bf16[128,128], index: 3, kind: input, shape index: {}]
  %s4 = inlined_call_operand.vmem [shape: f32[1,128], index: 4, kind: input, shape index: {}]
  %s5 = inlined_call_operand.hbm [shape: bf16[128,128], index: 5, kind: input, shape index: {}]
  %s6 = inlined_call_operand.vmem [shape: f32[1,128], index: 6, kind: input, shape index: {}]
  %s7 = inlined_call_operand.hbm [shape: bf16[16,128], index: 7, kind: output, shape index: {}]
  %s8 = sld [smem:[#allocation0]]
  $region54: #{tpu_custom_call.1} parent=0
    _
  %s10 = ssub.s32 1, %s8
  %s11 = scalar_select 0, %s10, %s8
  $region1: #{tpu_custom_call.1} parent=0
    #allocation2 [shape = 'u8[4096]{0}', space=vmem, size = 0x1000, scoped, tag = 'input window, operand 0, single buffered']
    #allocation3 [shape = 's32[1]{0}', space=sflag, size = 0x4, scoped, tag = 'scoped memory for tpu_custom_call.1']
    #allocation4 [shape = 's32[1]{0}', space=sflag, size = 0x4, scoped, tag = 'scoped memory for tpu_custom_call.1']
    #allocation5 [shape = 'u8[8192]{0}', space=vmem, size = 0x2000, scoped, tag = 'input window, operand 1, single buffered']
    #allocation6 [shape = 's32[1]{0}', space=sflag, size = 0x4, scoped, tag = 'scoped memory for tpu_custom_call.1']
    #allocation7 [shape = 'u8[32768]{0}', space=vmem, size = 0x8000, scoped, tag = 'input window, operand 3, single buffered']
    #allocation8 [shape = 'u8[32768]{0}', space=vmem, size = 0x8000, scoped, tag = 'input window, operand 5, single buffered']
    #allocation9 [shape = 's32[1]{0}', space=sflag, size = 0x4, scoped, tag = 'scoped memory for tpu_custom_call.1']
    #allocation10 [shape = 'u8[4096]{0}', space=vmem, size = 0x1000, scoped, tag = 'output window, operand 0, single buffered']
    %12 = vsyncpa [#allocation3], 0
    %13 = vsyncpa [#allocation6], 0
    %14 = vsyncpa [#allocation9], 0
    %15 = vsyncpa [#allocation4], 0
    // Predicated region
    $region2: #{tpu_custom_call.1} parent=1 // pred_check
      _
    $region3: #{tpu_custom_call.1} parent=1 // pred_check_branch
      %17 = sbr.rel (0) target = $region5
    $region4: #{tpu_custom_call.1} parent=1 // pred_region
      %19 = vsyncadd [#allocation3], 0
      %s20 = sshll.u32 %s0, 4
      %s21 = int_to_ptr.hbm [resolvable:$true] %s20
      %s22 = sshll.u32 [#allocation2], 4
      %s23 = int_to_ptr.vmem [resolvable:$true] %s22
      %28 = dma.hbm_to_vmem [thread:$0]  %s21, 128, %s23, [#allocation3], 64, 64, 4
    $region5: #{tpu_custom_call.1} parent=1 // pred_fallthru
      _
    // Predicated region
    $region6: #{tpu_custom_call.1} parent=1 // pred_check
      _
    $region7: #{tpu_custom_call.1} parent=1 // pred_check_branch
      %30 = sbr.rel (0) target = $region9
    $region8: #{tpu_custom_call.1} parent=1 // pred_region
      %32 = vsyncadd [#allocation6], 0
      %s33 = sshll.u32 %s1, 4
      %s34 = int_to_ptr.hbm [resolvable:$true] %s33
      %s35 = sshll.u32 [#allocation5], 4
      %s36 = int_to_ptr.vmem [resolvable:$true] %s35
      %41 = dma.hbm_to_vmem [thread:$0]  %s34, 256, %s36, [#allocation6], 64, 64, 4
    $region9: #{tpu_custom_call.1} parent=1 // pred_fallthru
      _
    // Predicated region
    $region10: #{tpu_custom_call.1} parent=1 // pred_check
      _
    $region11: #{tpu_custom_call.1} parent=1 // pred_check_branch
      %43 = sbr.rel (0) target = $region13
    $region12: #{tpu_custom_call.1} parent=1 // pred_region
      _
    $region13: #{tpu_custom_call.1} parent=1 // pred_fallthru
      _
    // Predicated region
    $region14: #{tpu_custom_call.1} parent=1 // pred_check
      _
    $region15: #{tpu_custom_call.1} parent=1 // pred_check_branch
      %45 = sbr.rel (0) target = $region17
    $region16: #{tpu_custom_call.1} parent=1 // pred_region
      %47 = vsyncadd [#allocation6], 0
      %s48 = sshll.u32 %s3, 4
      %s49 = int_to_ptr.hbm [resolvable:$true] %s48
      %s50 = sshll.u32 [#allocation7], 4
      %s51 = int_to_ptr.vmem [resolvable:$true] %s50
      %56 = dma.hbm_to_vmem [thread:$0]  %s49, 1024, %s51, [#allocation6], 64, 64, 4
    $region17: #{tpu_custom_call.1} parent=1 // pred_fallthru
      _
    // Predicated region
    $region18: #{tpu_custom_call.1} parent=1 // pred_check
      _
    $region19: #{tpu_custom_call.1} parent=1 // pred_check_branch
      %58 = sbr.rel (0) target = $region21
    $region20: #{tpu_custom_call.1} parent=1 // pred_region
      _
    $region21: #{tpu_custom_call.1} parent=1 // pred_fallthru
      _
    // Predicated region
    $region22: #{tpu_custom_call.1} parent=1 // pred_check
      _
    $region23: #{tpu_custom_call.1} parent=1 // pred_check_branch
      %60 = sbr.rel (0) target = $region25
    $region24: #{tpu_custom_call.1} parent=1 // pred_region
      %62 = vsyncadd [#allocation9], 0
      %s63 = sshll.u32 %s5, 4
      %s64 = int_to_ptr.hbm [resolvable:$true] %s63
      %s65 = sshll.u32 [#allocation8], 4
      %s66 = int_to_ptr.vmem [resolvable:$true] %s65
      %71 = dma.hbm_to_vmem [thread:$0]  %s64, 1024, %s66, [#allocation9], 64, 64, 4
    $region25: #{tpu_custom_call.1} parent=1 // pred_fallthru
      _
    // Predicated region
    $region26: #{tpu_custom_call.1} parent=1 // pred_check
      _
    $region27: #{tpu_custom_call.1} parent=1 // pred_check_branch
      %73 = sbr.rel (0) target = $region29
    $region28: #{tpu_custom_call.1} parent=1 // pred_region
      _
    $region29: #{tpu_custom_call.1} parent=1 // pred_fallthru
      _
    // Predicated region
    $region30: #{tpu_custom_call.1} parent=1 // pred_check
      _
    $region31: #{tpu_custom_call.1} parent=1 // pred_check_branch
      %75 = sbr.rel (0) target = $region33
    $region32: #{tpu_custom_call.1} parent=1 // pred_region
      %77 = dma.done [#allocation3], 128
    $region33: #{tpu_custom_call.1} parent=1 // pred_fallthru
      _
    // Predicated region
    $region34: #{tpu_custom_call.1} parent=1 // pred_check
      _
    $region35: #{tpu_custom_call.1} parent=1 // pred_check_branch
      %79 = sbr.rel (0) target = $region37
    $region36: #{tpu_custom_call.1} parent=1 // pred_region
      %81 = dma.done [#allocation6], 256
    $region37: #{tpu_custom_call.1} parent=1 // pred_fallthru
      _
    // Predicated region
    $region38: #{tpu_custom_call.1} parent=1 // pred_check
      _
    $region39: #{tpu_custom_call.1} parent=1 // pred_check_branch
      %83 = sbr.rel (0) target = $region41
    $region40: #{tpu_custom_call.1} parent=1 // pred_region
      %85 = dma.done [#allocation6], 1024
    $region41: #{tpu_custom_call.1} parent=1 // pred_fallthru
      _
    // Predicated region
    $region42: #{tpu_custom_call.1} parent=1 // pred_check
      _
    $region43: #{tpu_custom_call.1} parent=1 // pred_check_branch
      %87 = sbr.rel (0) target = $region45
    $region44: #{tpu_custom_call.1} parent=1 // pred_region
      %89 = dma.done [#allocation9], 1024
    $region45: #{tpu_custom_call.1} parent=1 // pred_fallthru
      _
    %v91 = vld [vmem:[#allocation2] sm:$0xf]
    %v92 = vld [vmem:[#allocation2 + $0x4] sm:$0xf]
    %v93 = vld [vmem:[#allocation5] sm:$0xf]
    %v94 = vld [vmem:[#allocation5 + $0x4] sm:$0xf]
    %v95 = vld [vmem:[#allocation5 + $0x8] sm:$0xf]
    %v96 = vld [vmem:[#allocation5 + $0xc] sm:$0xf]
    %v97 = vld [vmem:[%s2] sm:$0x1]
    %v99 = vperm.slane %v97, 0
    %v103 = vunpack.c.l.b16 %v91
    %v104 = vunpack.c.l.b16 %v92
    %v105 = vpack.c.b16 %v104, %v103
    %v110 = vunpack.c.l.b16 %v93
    %v111 = vunpack.c.l.b16 %v94
    %v112 = vunpack.c.l.b16 %v95
    %v113 = vunpack.c.l.b16 %v96
    %v114 = vpack.c.b16 %v111, %v110
    %v115 = vpack.c.b16 %v113, %v112
    %vm118 = vcmask 261120
    %v120 = vsel %vm118, %v105, 0
    %122 = vmatpush.bf16.msra.mxu0 0
    %123 = vmatpush.bf16.msra.mxu0 0
    %124 = vmatpush.bf16.msra.mxu0 0
    %125 = vmatpush.bf16.msra.mxu0 0
    %126 = vmatpush.bf16.msra.mxu0 0
    %127 = vmatpush.bf16.msra.mxu0 0
    %128 = vmatpush.bf16.msra.mxu0 %v115
    %129 = vmatpush.bf16.msra.mxu0 %v114
    %130 = vmatmul.bf16.gmra.mxu0 %v120
    %v131 = vpop.f32.mrf.mxu0
    %v132 = vadd.f32 %v99, %v131
    %v133 = vpop.f32.mrf.mxu0
    %v134 = vadd.f32 %v99, %v133
    %135 = vdwg.mxu0
    %v136 = vmax.f32 %v132, 0.0
    %v137 = vmax.f32 %v134, 0.0
    %v138 = vpack.c.bf16 %v137, %v136
    %v139 = vld [vmem:[#allocation7] sm:$0xf]
    %v140 = vld [vmem:[#allocation7 + $0x4] sm:$0xf]
    %v141 = vld [vmem:[#allocation7 + $0x8] sm:$0xf]
    %v142 = vld [vmem:[#allocation7 + $0xc] sm:$0xf]
    %v143 = vld [vmem:[#allocation7 + $0x10] sm:$0xf]
    %v144 = vld [vmem:[#allocation7 + $0x14] sm:$0xf]
    %v145 = vld [vmem:[#allocation7 + $0x18] sm:$0xf]
    %v146 = vld [vmem:[#allocation7 + $0x1c] sm:$0xf]
    %v147 = vld [vmem:[#allocation7 + $0x20] sm:$0xf]
    %v148 = vld [vmem:[#allocation7 + $0x24] sm:$0xf]
    %v149 = vld [vmem:[#allocation7 + $0x28] sm:$0xf]
    %v150 = vld [vmem:[#allocation7 + $0x2c] sm:$0xf]
    %v151 = vld [vmem:[#allocation7 + $0x30] sm:$0xf]
    %v152 = vld [vmem:[#allocation7 + $0x34] sm:$0xf]
    %v153 = vld [vmem:[#allocation7 + $0x38] sm:$0xf]
    %v154 = vld [vmem:[#allocation7 + $0x3c] sm:$0xf]
    %v155 = vld [vmem:[%s4] sm:$0x1]
    %v157 = vperm.slane %v155, 0
    %v175 = vunpack.c.l.b16 %v139
    %v176 = vunpack.c.l.b16 %v140
    %v177 = vunpack.c.l.b16 %v141
    %v178 = vunpack.c.l.b16 %v142
    %v179 = vunpack.c.l.b16 %v143
    %v180 = vunpack.c.l.b16 %v144
    %v181 = vunpack.c.l.b16 %v145
    %v182 = vunpack.c.l.b16 %v146
    %v183 = vunpack.c.l.b16 %v147
    %v184 = vunpack.c.l.b16 %v148
    %v185 = vunpack.c.l.b16 %v149
    %v186 = vunpack.c.l.b16 %v150
    %v187 = vunpack.c.l.b16 %v151
    %v188 = vunpack.c.l.b16 %v152
    %v189 = vunpack.c.l.b16 %v153
    %v190 = vunpack.c.l.b16 %v154
    %v191 = vpack.c.b16 %v176, %v175
    %v192 = vpack.c.b16 %v178, %v177
    %v193 = vpack.c.b16 %v180, %v179
    %v194 = vpack.c.b16 %v182, %v181
    %v195 = vpack.c.b16 %v184, %v183
    %v196 = vpack.c.b16 %v186, %v185
    %v197 = vpack.c.b16 %v188, %v187
    %v198 = vpack.c.b16 %v190, %v189
    %207 = vmatpush.bf16.msra.mxu0 %v198
    %208 = vmatpush.bf16.msra.mxu0 %v197
    %209 = vmatpush.bf16.msra.mxu0 %v196
    %210 = vmatpush.bf16.msra.mxu0 %v195
    %211 = vmatpush.bf16.msra.mxu0 %v194
    %212 = vmatpush.bf16.msra.mxu0 %v193
    %213 = vmatpush.bf16.msra.mxu0 %v192
    %214 = vmatpush.bf16.msra.mxu0 %v191
    %215 = vmatmul.bf16.gmra.mxu0 %v138
    %v216 = vpop.f32.mrf.mxu0
    %v217 = vadd.f32 %v157, %v216
    %v218 = vpop.f32.mrf.mxu0
    %v219 = vadd.f32 %v157, %v218
    %220 = vdwg.mxu0
    %v221 = vmax.f32 %v217, 0.0
    %v222 = vmax.f32 %v219, 0.0
    %v223 = vpack.c.bf16 %v222, %v221
    %v224 = vld [vmem:[#allocation8] sm:$0xf]
    %v225 = vld [vmem:[#allocation8 + $0x4] sm:$0xf]
    %v226 = vld [vmem:[#allocation8 + $0x8] sm:$0xf]
    %v227 = vld [vmem:[#allocation8 + $0xc] sm:$0xf]
    %v228 = vld [vmem:[#allocation8 + $0x10] sm:$0xf]
    %v229 = vld [vmem:[#allocation8 + $0x14] sm:$0xf]
    %v230 = vld [vmem:[#allocation8 + $0x18] sm:$0xf]
    %v231 = vld [vmem:[#allocation8 + $0x1c] sm:$0xf]
    %v232 = vld [vmem:[#allocation8 + $0x20] sm:$0xf]
    %v233 = vld [vmem:[#allocation8 + $0x24] sm:$0xf]
    %v234 = vld [vmem:[#allocation8 + $0x28] sm:$0xf]
    %v235 = vld [vmem:[#allocation8 + $0x2c] sm:$0xf]
    %v236 = vld [vmem:[#allocation8 + $0x30] sm:$0xf]
    %v237 = vld [vmem:[#allocation8 + $0x34] sm:$0xf]
    %v238 = vld [vmem:[#allocation8 + $0x38] sm:$0xf]
    %v239 = vld [vmem:[#allocation8 + $0x3c] sm:$0xf]
    %v240 = vld [vmem:[%s6] sm:$0x1]
    %v242 = vperm.slane %v240, 0
    %v260 = vunpack.c.l.b16 %v224
    %v261 = vunpack.c.l.b16 %v225
    %v262 = vunpack.c.l.b16 %v226
    %v263 = vunpack.c.l.b16 %v227
    %v264 = vunpack.c.l.b16 %v228
    %v265 = vunpack.c.l.b16 %v229
    %v266 = vunpack.c.l.b16 %v230
    %v267 = vunpack.c.l.b16 %v231
    %v268 = vunpack.c.l.b16 %v232
    %v269 = vunpack.c.l.b16 %v233
    %v270 = vunpack.c.l.b16 %v234
    %v271 = vunpack.c.l.b16 %v235
    %v272 = vunpack.c.l.b16 %v236
    %v273 = vunpack.c.l.b16 %v237
    %v274 = vunpack.c.l.b16 %v238
    %v275 = vunpack.c.l.b16 %v239
    %v276 = vpack.c.b16 %v261, %v260
    %v277 = vpack.c.b16 %v263, %v262
    %v278 = vpack.c.b16 %v265, %v264
    %v279 = vpack.c.b16 %v267, %v266
    %v280 = vpack.c.b16 %v269, %v268
    %v281 = vpack.c.b16 %v271, %v270
    %v282 = vpack.c.b16 %v273, %v272
    %v283 = vpack.c.b16 %v275, %v274
    %292 = vmatpush.bf16.msra.mxu0 %v283
    %293 = vmatpush.bf16.msra.mxu0 %v282
    %294 = vmatpush.bf16.msra.mxu0 %v281
    %295 = vmatpush.bf16.msra.mxu0 %v280
    %296 = vmatpush.bf16.msra.mxu0 %v279
    %297 = vmatpush.bf16.msra.mxu0 %v278
    %298 = vmatpush.bf16.msra.mxu0 %v277
    %299 = vmatpush.bf16.msra.mxu0 %v276
    %300 = vmatmul.bf16.gmra.mxu0 %v223
    %v301 = vpop.f32.mrf.mxu0
    %v302 = vadd.f32 %v242, %v301
    %v303 = vpop.f32.mrf.mxu0
    %v304 = vadd.f32 %v242, %v303
    %305 = vdwg.mxu0
    %v306 = vxor.u32 %v302, 2147483648
    %v307 = vxor.u32 %v304, 2147483648
    %v308 = vmul.f32 %v306, 1.442695
    %v309 = vpow.pop %v308
    %v310 = vmul.f32 %v307, 1.442695
    %v311 = vpow.pop %v310
    %v312 = vadd.f32 %v309, 1.0
    %v313 = vadd.f32 %v311, 1.0
    %v314 = vrcp.pop %v312
    %v315 = vmul.f32 %v312, %v314
    %v316 = vsub.f32 1.0, %v315
    %v317 = vmul.f32 %v314, %v316
    %v318 = vadd.f32 %v314, %v317
    %vm319 = vweird.f32 %v312
    %vm320 = vweird.f32 %v314
    %vm321 = vmor %vm319, %vm320
    %v322 = vsel %vm321, %v314, %v318
    %v323 = vand.u32 2147483647, %v312
    %vm324 = vcmp.eq.f32.partialorder %v323, 8.507059e+37
    %v325 = vand.u32 %v312, 2147483648
    %v326 = vor.u32 1.1754944e-38, %v325
    %v327 = vsel %vm324, %v326, %v322
    %v328 = vmul.f32 1.0, %v327
    %v329 = vrcp.pop %v313
    %v330 = vmul.f32 %v313, %v329
    %v331 = vsub.f32 1.0, %v330
    %v332 = vmul.f32 %v329, %v331
    %v333 = vadd.f32 %v329, %v332
    %vm334 = vweird.f32 %v313
    %vm335 = vweird.f32 %v329
    %vm336 = vmor %vm334, %vm335
    %v337 = vsel %vm336, %v329, %v333
    %v338 = vand.u32 2147483647, %v313
    %vm339 = vcmp.eq.f32.partialorder %v338, 8.507059e+37
    %v340 = vand.u32 %v313, 2147483648
    %v341 = vor.u32 1.1754944e-38, %v340
    %v342 = vsel %vm339, %v341, %v337
    %v343 = vmul.f32 1.0, %v342
    %v344 = vpack.c.bf16 %v328, %v328
    %v345 = vpack.c.bf16 %v343, %v343
    %346 = vst [vmem:[#allocation10] sm:$0xf] %v344
    %347 = vst [vmem:[#allocation10 + $0x4] sm:$0xf] %v345
    // Predicated region
    $region46: #{tpu_custom_call.1} parent=1 // pred_check
      _
    $region47: #{tpu_custom_call.1} parent=1 // pred_check_branch
      %349 = sbr.rel (0) target = $region49
    $region48: #{tpu_custom_call.1} parent=1 // pred_region
      %351 = vsyncadd [#allocation4], 0
      %s352 = sshll.u32 [#allocation10], 4
      %s353 = int_to_ptr.vmem [resolvable:$true] %s352
      %s354 = sshll.u32 %s7, 4
      %s355 = int_to_ptr.hbm [resolvable:$true] %s354
      %360 = dma.vmem_to_hbm [thread:$0]  %s353, 128, %s355, [#allocation4], 64, 64, 4
    $region49: #{tpu_custom_call.1} parent=1 // pred_fallthru
      _
    // Predicated region
    $region50: #{tpu_custom_call.1} parent=1 // pred_check
      _
    $region51: #{tpu_custom_call.1} parent=1 // pred_check_branch
      %362 = sbr.rel (0) target = $region53
    $region52: #{tpu_custom_call.1} parent=1 // pred_region
      %364 = dma.done [#allocation4], 128
    $region53: #{tpu_custom_call.1} parent=1 // pred_fallthru
      _
    %365 = vsyncpa [#allocation3], 1
    %366 = vsyncpa [#allocation6], 1
    %367 = vsyncpa [#allocation9], 1
    %368 = vsyncpa [#allocation4], 1

</llo_original>
